<compile_context>
chip_gen: v7x
topology: tpu7x:2x2x1
jax: 0.10.0
libtpu: 0.0.40
codegen_flags: <defaults>
</compile_context>

<pallas_src>
import functools

import jax
import jax.numpy as jnp
from jax.experimental import pallas as pl
from jax.experimental.pallas import tpu as pltpu


# ---------------------------------------------------------------------------
# Kernels
# ---------------------------------------------------------------------------
def _se_scale(x, w1t, b1, w2t, b2, inv_hw):
    """Per-(batch, channel) sigmoid scale.  x: (Bt, C, HW) -> (Bt, C, 1) f32."""
    # AdaptiveAvgPool2d((1,1)): f32-accumulated sum over the flattened spatial
    # axis (no full-slab f32 copy), divided by the true spatial size.
    pooled = jnp.sum(x, axis=2, dtype=jnp.float32) * inv_hw            # (Bt, C)
    h = jnp.dot(pooled, w1t, preferred_element_type=jnp.float32) + b1
    h = jnp.maximum(h, 0.0)                                            # (Bt, hidden)
    s = jnp.dot(h, w2t, preferred_element_type=jnp.float32) + b2
    return jax.nn.sigmoid(s)[:, :, None]                               # (Bt, C, 1)


def _se_kernel_self(x_ref, w1t_ref, b1_ref, w2t_ref, b2_ref, o_ref, *, inv_hw):
    """target is None: read x once, scale it in place."""
    x = x_ref[...]                                                     # (Bt, C, HW)
    s = _se_scale(x, w1t_ref[...], b1_ref[...], w2t_ref[...], b2_ref[...], inv_hw)
    # Multiply in the streaming dtype (exact for f32 inputs; for bf16 the
    # single extra rounding of the scale keeps VMEM pressure at 1x the slab).
    o_ref[...] = (x * s.astype(x.dtype)).astype(o_ref.dtype)


def _se_kernel_target(x_ref, t_ref, w1t_ref, b1_ref, w2t_ref, b2_ref, o_ref,
                      *, inv_hw):
    """target given: scale comes from x, multiply is applied to target."""
    s = _se_scale(x_ref[...], w1t_ref[...], b1_ref[...], w2t_ref[...], b2_ref[...],
                  inv_hw)
    t = t_ref[...]                                                     # (Bt, C, HW)
    o_ref[...] = (t * s.astype(t.dtype)).astype(o_ref.dtype)


# ---------------------------------------------------------------------------
# Tiling / VMEM policy
# ---------------------------------------------------------------------------
def _vmem_params():
    """(vmem_limit_bytes, min_grid_steps) per TPU generation."""
    try:
        kind = jax.devices()[0].device_kind.lower()
    except Exception:  # pragma: no cover - defensive
        kind = ""
    if "v7" in kind:
        # 64 MiB physical VMEM: leave headroom for compiler scratch; want
        # >= 2 grid steps per TensorCore (2 TCs).
        return 48 << 20, 4
    if "v5" in kind or "v6" in kind:
        # 128 MiB physical VMEM, single TensorCore: >= 3 steps only helps
        # pipelining; otherwise just maximize block size.
        return 100 << 20, 3
    # Unknown generation: conservative.
    return 32 << 20, 3


def _pick_batch_tile(b, per_sample_bytes, per_slab_budget, min_steps):
    """Largest Bt whose (Bt, C, HW) block fits the per-slab budget, preferring
    >= min_steps grid steps when the batch is big enough to allow it."""
    max_bt = max(1, min(b, per_slab_budget // max(1, per_sample_bytes)))
    if b >= min_steps > 1:
        # Largest Bt with cdiv(b, Bt) >= min_steps.
        bt_for_steps = max(1, (b - 1) // (min_steps - 1))
        return min(max_bt, bt_for_steps)
    return max_bt


# ---------------------------------------------------------------------------
# Wrapper
# ---------------------------------------------------------------------------
def se_block(x, w1, b1, w2, b2, target=None):
    """x: (B, C, H, W).  w1: (hidden, C, 1, 1), b1: (hidden,),
    w2: (C, hidden, 1, 1), b2: (C,).  Returns (B, C, H, W)."""
    b, c, hgt, wid = x.shape
    hw = hgt * wid
    hidden = w1.shape[0]

    use_target = target is not None
    if use_target:
        assert target.shape[1] == c, "target's channels must equal to the input's"
        # TODO(synk): the PyTorch module only requires matching channels and
        # broadcasts the (B,C,1,1) weights; this kernel requires target.shape == x.shape.
        assert target.shape == x.shape, "kernel assumes target matches x's shape"

    # Free layout-preserving reshape; no HBM pad or slice anywhere.
    x2 = x.reshape(b, c, hw)
    in_arrays = [x2]
    if use_target:
        in_arrays.append(target.reshape(b, c, hw))

    # Weight layout for (Bt, C) @ (C, hidden) / (Bt, hidden) @ (hidden, C);
    # one-off reshapes of tiny arrays outside the kernel.
    w1t = jnp.transpose(w1.reshape(hidden, c))                          # (C, hidden)
    b1r = b1.reshape(1, hidden)
    w2t = jnp.transpose(w2.reshape(c, hidden))                          # (hidden, C)
    b2r = b2.reshape(1, c)
    in_arrays += [w1t, b1r, w2t, b2r]

    out_dtype = target.dtype if use_target else x.dtype
    itemsize = max(jnp.dtype(x.dtype).itemsize, jnp.dtype(out_dtype).itemsize)

    vmem_limit, min_steps = _vmem_params()
    num_slabs = 3 if use_target else 2            # x (+ target) + out
    headroom = 4 << 20                            # constants + compiler scratch
    per_slab_budget = min(16 << 20,
                          max(1 << 20, (vmem_limit - headroom) // (2 * num_slabs)))
    bt = _pick_batch_tile(b, c * hw * itemsize, per_slab_budget, min_steps)
    grid = (pl.cdiv(b, bt),)

    slab_spec = pl.BlockSpec((bt, c, hw), lambda i: (i, 0, 0))
    const_spec = lambda shape: pl.BlockSpec(shape, lambda i: (0, 0))

    in_specs = [slab_spec]
    if use_target:
        in_specs.append(slab_spec)
    in_specs += [const_spec((c, hidden)), const_spec((1, hidden)),
                 const_spec((hidden, c)), const_spec((1, c))]

    kernel = _se_kernel_target if use_target else _se_kernel_self
    kernel = functools.partial(kernel, inv_hw=1.0 / hw)

    cost = pl.CostEstimate(
        flops=int(2 * b * c * hidden * 2 + 2 * b * c * hw),
        transcendentals=int(b * c),
        bytes_accessed=int(num_slabs * b * c * hw * itemsize),
    )

    out = pl.pallas_call(
        kernel,
        out_shape=jax.ShapeDtypeStruct((b, c, hw), out_dtype),
        grid_spec=pltpu.PrefetchScalarGridSpec(
            num_scalar_prefetch=0,
            grid=grid,
            in_specs=in_specs,
            out_specs=slab_spec,
        ),
        compiler_params=pltpu.CompilerParams(
            dimension_semantics=("parallel",),
            vmem_limit_bytes=vmem_limit,
        ),
        cost_estimate=cost,
    )(*in_arrays)

    return out.reshape(b, c, hgt, wid)


# ---------------------------------------------------------------------------
# Pure-JAX reference (matches the PyTorch module)
# ---------------------------------------------------------------------------
def se_block_ref(x, w1, b1, w2, b2, target=None):
    b, c, _, _ = x.shape
    hidden = w1.shape[0]
    pooled = jnp.mean(x, axis=(2, 3))                                   # (B, C)
    h = jnp.maximum(pooled @ w1.reshape(hidden, c).T + b1, 0.0)
    s = jax.nn.sigmoid(h @ w2.reshape(c, hidden).T + b2)                # (B, C)
    w = s[:, :, None, None]
    t = x if target is None else target
    return w * t


if __name__ == "__main__":
    # Small shapes consistent with the module (channel, hidden_node scaled down).
    B, C, H, W = 2, 16, 16, 16
    HIDDEN = 8

    key = jax.random.PRNGKey(0)
    kx, kt, k1, kb1, k2, kb2 = jax.random.split(key, 6)

    x = jax.random.normal(kx, (B, C, H, W), dtype=jnp.float32)
    tgt = jax.random.normal(kt, (B, C, H, W), dtype=jnp.float32)
    # Conv2d(channel, hidden, 1): weight (hidden, C, 1, 1), bias (hidden,)
    w1 = jax.random.normal(k1, (HIDDEN, C, 1, 1), dtype=jnp.float32) * 0.1
    b1 = jax.random.normal(kb1, (HIDDEN,), dtype=jnp.float32) * 0.1
    # Conv2d(hidden, channel, 1): weight (C, hidden, 1, 1), bias (C,)
    w2 = jax.random.normal(k2, (C, HIDDEN, 1, 1), dtype=jnp.float32) * 0.1
    b2 = jax.random.normal(kb2, (C,), dtype=jnp.float32) * 0.1

    # Path 1: target is None (single-input kernel, no duplicate DMA).
    out = jax.block_until_ready(se_block(x, w1, b1, w2, b2))
    ref = se_block_ref(x, w1, b1, w2, b2)
    assert out.shape == (B, C, H, W)
    assert jnp.allclose(out, ref, atol=1e-5, rtol=1e-5), "mismatch (no target)"

    # Path 2: explicit target.
    out_t = jax.block_until_ready(se_block(x, w1, b1, w2, b2, target=tgt))
    ref_t = se_block_ref(x, w1, b1, w2, b2, target=tgt)
    assert jnp.allclose(out_t, ref_t, atol=1e-5, rtol=1e-5), "mismatch (target)"

    print("KERNEL_OK")
</pallas_src>

<mosaic_0001>
module attributes {stable_mosaic.version = 11 : i64} {
  func.func @_se_kernel_self(%arg0: i32, %arg1: memref<2x16x256xf32, #tpu.memory_space<vmem>>, %arg2: memref<16x8xf32, #tpu.memory_space<vmem>>, %arg3: memref<1x8xf32, #tpu.memory_space<vmem>>, %arg4: memref<8x16xf32, #tpu.memory_space<vmem>>, %arg5: memref<1x16xf32, #tpu.memory_space<vmem>>, %arg6: memref<2x16x256xf32, #tpu.memory_space<vmem>>) attributes {dimension_semantics = [#tpu.dimension_semantics<parallel>], iteration_bounds = array<i64: 1>, scalar_prefetch = 0 : i64, scratch_operands = 0 : i64, tpu.core_type = #tpu.core_type<tc>, window_params = [{transform_indices = @transform_0, window_bounds = array<i64: 2, 16, 256>}, {pipeline_mode = #tpu.pipeline_mode<synchronous>, transform_indices = @transform_1, window_bounds = array<i64: 16, 8>}, {pipeline_mode = #tpu.pipeline_mode<synchronous>, transform_indices = @transform_2, window_bounds = array<i64: 1, 8>}, {pipeline_mode = #tpu.pipeline_mode<synchronous>, transform_indices = @transform_3, window_bounds = array<i64: 8, 16>}, {pipeline_mode = #tpu.pipeline_mode<synchronous>, transform_indices = @transform_4, window_bounds = array<i64: 1, 16>}, {transform_indices = @transform_5, window_bounds = array<i64: 2, 16, 256>}]} {
    %c0 = arith.constant 0 : index
    %c0_0 = arith.constant 0 : index
    %c0_1 = arith.constant 0 : index
    %0 = vector.load %arg1[%c0, %c0_0, %c0_1] : memref<2x16x256xf32, #tpu.memory_space<vmem>>, vector<2x16x256xf32>
    %c0_2 = arith.constant 0 : index
    %c0_3 = arith.constant 0 : index
    %1 = vector.load %arg2[%c0_2, %c0_3] : memref<16x8xf32, #tpu.memory_space<vmem>>, vector<16x8xf32>
    %c0_4 = arith.constant 0 : index
    %c0_5 = arith.constant 0 : index
    %2 = vector.load %arg3[%c0_4, %c0_5] : memref<1x8xf32, #tpu.memory_space<vmem>>, vector<1x8xf32>
    %c0_6 = arith.constant 0 : index
    %c0_7 = arith.constant 0 : index
    %3 = vector.load %arg4[%c0_6, %c0_7] : memref<8x16xf32, #tpu.memory_space<vmem>>, vector<8x16xf32>
    %c0_8 = arith.constant 0 : index
    %c0_9 = arith.constant 0 : index
    %4 = vector.load %arg5[%c0_8, %c0_9] : memref<1x16xf32, #tpu.memory_space<vmem>>, vector<1x16xf32>
    %cst = arith.constant dense<0.000000e+00> : vector<2x16xf32>
    %5 = vector.multi_reduction <add>, %0, %cst [2] : vector<2x16x256xf32> to vector<2x16xf32>
    %cst_10 = arith.constant 3.906250e-03 : f32
    %6 = vector.broadcast %cst_10 : f32 to vector<2x16xf32>
    %7 = arith.mulf %5, %6 : vector<2x16xf32>
    %cst_11 = arith.constant dense<0.000000e+00> : vector<2x8xf32>
    %8 = tpu.matmul %7, %1, %cst_11 {dimension_numbers = #tpu.dot_dimension_numbers<[1], [0], [0], [1], [0, 0, 1, 1], [], []>} : vector<2x16xf32>, vector<16x8xf32>, vector<2x8xf32> -> vector<2x8xf32>
    %9 = vector.broadcast %2 : vector<1x8xf32> to vector<2x8xf32>
    %10 = arith.addf %8, %9 : vector<2x8xf32>
    %cst_12 = arith.constant 0.000000e+00 : f32
    %11 = vector.broadcast %cst_12 : f32 to vector<2x8xf32>
    %12 = arith.maximumf %10, %11 : vector<2x8xf32>
    %cst_13 = arith.constant dense<0.000000e+00> : vector<2x16xf32>
    %13 = tpu.matmul %12, %3, %cst_13 {dimension_numbers = #tpu.dot_dimension_numbers<[1], [0], [0], [1], [0, 0, 1, 1], [], []>} : vector<2x8xf32>, vector<8x16xf32>, vector<2x16xf32> -> vector<2x16xf32>
    %14 = vector.broadcast %4 : vector<1x16xf32> to vector<2x16xf32>
    %15 = arith.addf %13, %14 : vector<2x16xf32>
    %16 = arith.negf %15 : vector<2x16xf32>
    %17 = math.exp %16 : vector<2x16xf32>
    %cst_14 = arith.constant 1.000000e+00 : f32
    %18 = vector.broadcast %cst_14 : f32 to vector<2x16xf32>
    %19 = arith.addf %18, %17 : vector<2x16xf32>
    %20 = arith.divf %18, %19 : vector<2x16xf32>
    %21 = vector.shape_cast %20 : vector<2x16xf32> to vector<2x16x1xf32>
    %22 = vector.broadcast %21 : vector<2x16x1xf32> to vector<2x16x256xf32>
    %23 = arith.mulf %0, %22 : vector<2x16x256xf32>
    %c0_15 = arith.constant 0 : index
    %c0_16 = arith.constant 0 : index
    %c0_17 = arith.constant 0 : index
    %24 = vector.load %arg6[%c0_15, %c0_16, %c0_17] : memref<2x16x256xf32, #tpu.memory_space<vmem>>, vector<2x16x256xf32>
    tpu.vector_store %arg6[%c0_15, %c0_16, %c0_17], %23 {strides = array<i32>} : memref<2x16x256xf32, #tpu.memory_space<vmem>>, vector<2x16x256xf32>,
    return
  }
  func.func @transform_0(%arg0: i32) -> (i32, i32, i32) {
    %c0_i32 = arith.constant 0 : i32
    %c0_i32_0 = arith.constant 0 : i32
    %c0_i32_1 = arith.constant 0 : i32
    return %arg0, %c0_i32, %c0_i32_0 : i32, i32, i32
  }
  func.func @transform_1(%arg0: i32) -> (i32, i32) {
    %c0_i32 = arith.constant 0 : i32
    %c0_i32_0 = arith.constant 0 : i32
    %c0_i32_1 = arith.constant 0 : i32
    return %c0_i32, %c0_i32_0 : i32, i32
  }
  func.func @transform_2(%arg0: i32) -> (i32, i32) {
    %c0_i32 = arith.constant 0 : i32
    %c0_i32_0 = arith.constant 0 : i32
    %c0_i32_1 = arith.constant 0 : i32
    return %c0_i32, %c0_i32_0 : i32, i32
  }
  func.func @transform_3(%arg0: i32) -> (i32, i32) {
    %c0_i32 = arith.constant 0 : i32
    %c0_i32_0 = arith.constant 0 : i32
    %c0_i32_1 = arith.constant 0 : i32
    return %c0_i32, %c0_i32_0 : i32, i32
  }
  func.func @transform_4(%arg0: i32) -> (i32, i32) {
    %c0_i32 = arith.constant 0 : i32
    %c0_i32_0 = arith.constant 0 : i32
    %c0_i32_1 = arith.constant 0 : i32
    return %c0_i32, %c0_i32_0 : i32, i32
  }
  func.func @transform_5(%arg0: i32) -> (i32, i32, i32) {
    %c0_i32 = arith.constant 0 : i32
    %c0_i32_0 = arith.constant 0 : i32
    %c0_i32_1 = arith.constant 0 : i32
    return %arg0, %c0_i32, %c0_i32_0 : i32, i32, i32
  }
}

</mosaic_0001>

<llo_original>
// kernel: tpu_custom_call.1
$region0: #{tpu_custom_call.1}
  #allocation0 [shape = 'u32[]', space=smem, size = 0x4, offset = 0x4, fixed_abs, tag = 'smem constant byte address 0x4 - core index']
  #allocation1 [shape = 'u32[144,128]{1,0:T(1,128)}', space=vmem, size = 0x12000, scoped, tag = 'internal scratch']
  %s0 = inlined_call_operand.hbm [shape: f32[2,16,256], index: 0, kind: input, shape index: {}]
  %s1 = inlined_call_operand.vmem [shape: f32[16,8], index: 1, kind: input, shape index: {}]
  %s2 = inlined_call_operand.vmem [shape: f32[1,8], index: 2, kind: input, shape index: {}]
  %s3 = inlined_call_operand.vmem [shape: f32[8,16], index: 3, kind: input, shape index: {}]
  %s4 = inlined_call_operand.vmem [shape: f32[1,16], index: 4, kind: input, shape index: {}]
  %s5 = inlined_call_operand.hbm [shape: f32[2,16,256], index: 5, kind: output, shape index: {}]
  %s6 = sld [smem:[#allocation0]]
  $region34: #{tpu_custom_call.1} parent=0
    _
  %s8 = ssub.s32 1, %s6
  %s9 = scalar_select 0, %s8, %s6
  $region1: #{tpu_custom_call.1} parent=0
    #allocation2 [shape = 'u8[32768]{0}', space=vmem, size = 0x8000, scoped, tag = 'input window, operand 0, single buffered']
    #allocation3 [shape = 's32[1]{0}', space=sflag, size = 0x4, scoped, tag = 'scoped memory for tpu_custom_call.1']
    #allocation4 [shape = 's32[1]{0}', space=sflag, size = 0x4, scoped, tag = 'scoped memory for tpu_custom_call.1']
    #allocation5 [shape = 'u8[32768]{0}', space=vmem, size = 0x8000, scoped, tag = 'output window, operand 0, single buffered']
    %10 = vsyncpa [#allocation3], 0
    %11 = vsyncpa [#allocation4], 0
    // Predicated region
    $region2: #{tpu_custom_call.1} parent=1 // pred_check
      _
    $region3: #{tpu_custom_call.1} parent=1 // pred_check_branch
      %13 = sbr.rel (0) target = $region5
    $region4: #{tpu_custom_call.1} parent=1 // pred_region
      %s15 = ssub.s32 1024, 1024
      %16 = vsyncadd [#allocation3], %s15
      %s17 = sshll.u32 [#allocation2], 4
      %s18 = int_to_ptr.vmem [resolvable:$true] %s17
      %23 = dma.hbm_to_vmem [thread:$0]  %s0, 1024, %s18, [#allocation3], 256, 256, 16
    $region5: #{tpu_custom_call.1} parent=1 // pred_fallthru
      _
    // Predicated region
    $region6: #{tpu_custom_call.1} parent=1 // pred_check
      _
    $region7: #{tpu_custom_call.1} parent=1 // pred_check_branch
      %25 = sbr.rel (0) target = $region9
    $region8: #{tpu_custom_call.1} parent=1 // pred_region
      _
    $region9: #{tpu_custom_call.1} parent=1 // pred_fallthru
      _
    // Predicated region
    $region10: #{tpu_custom_call.1} parent=1 // pred_check
      _
    $region11: #{tpu_custom_call.1} parent=1 // pred_check_branch
      %27 = sbr.rel (0) target = $region13
    $region12: #{tpu_custom_call.1} parent=1 // pred_region
      _
    $region13: #{tpu_custom_call.1} parent=1 // pred_fallthru
      _
    // Predicated region
    $region14: #{tpu_custom_call.1} parent=1 // pred_check
      _
    $region15: #{tpu_custom_call.1} parent=1 // pred_check_branch
      %29 = sbr.rel (0) target = $region17
    $region16: #{tpu_custom_call.1} parent=1 // pred_region
      _
    $region17: #{tpu_custom_call.1} parent=1 // pred_fallthru
      _
    // Predicated region
    $region18: #{tpu_custom_call.1} parent=1 // pred_check
      _
    $region19: #{tpu_custom_call.1} parent=1 // pred_check_branch
      %31 = sbr.rel (0) target = $region21
    $region20: #{tpu_custom_call.1} parent=1 // pred_region
      _
    $region21: #{tpu_custom_call.1} parent=1 // pred_fallthru
      _
    // Predicated region
    $region22: #{tpu_custom_call.1} parent=1 // pred_check
      _
    $region23: #{tpu_custom_call.1} parent=1 // pred_check_branch
      %33 = sbr.rel (0) target = $region25
    $region24: #{tpu_custom_call.1} parent=1 // pred_region
      %34 = dma.done [#allocation3], 1024
    $region25: #{tpu_custom_call.1} parent=1 // pred_fallthru
      _
    %v35 = vld [vmem:[#allocation2] sm:$0xff]
    %v36 = vld [vmem:[#allocation2 + $0x8] sm:$0xff]
    %v37 = vld [vmem:[#allocation2 + $0x10] sm:$0xff]
    %v38 = vld [vmem:[#allocation2 + $0x18] sm:$0xff]
    %v39 = vld [vmem:[#allocation2 + $0x20] sm:$0xff]
    %v40 = vld [vmem:[#allocation2 + $0x28] sm:$0xff]
    %v41 = vld [vmem:[#allocation2 + $0x30] sm:$0xff]
    %v42 = vld [vmem:[#allocation2 + $0x38] sm:$0xff]
    %v43 = vld [vmem:[%s1] sm:$0xff]
    %v44 = vld [vmem:[%s1 + $0x8] sm:$0xff]
    %v45 = vld [vmem:[%s2] sm:$0x1]
    %v46 = vld [vmem:[%s3] sm:$0xff]
    %v47 = vld [vmem:[%s4] sm:$0x1]
    %v48 = vadd.f32 %v35, %v36
    %49 = vadd.xlane.f32.xlu0 %v48
    %v50 = vpop.xlane.xlu0 %49
    %v51 = vadd.f32 %v37, %v38
    %52 = vadd.xlane.f32.xlu0 %v51
    %v53 = vpop.xlane.xlu0 %52
    %v54 = vadd.f32 %v39, %v40
    %55 = vadd.xlane.f32.xlu0 %v54
    %v56 = vpop.xlane.xlu0 %55
    %v57 = vadd.f32 %v41, %v42
    %58 = vadd.xlane.f32.xlu0 %v57
    %v59 = vpop.xlane.xlu0 %58
    %v60 = vmul.f32 %v50, 0.00390625
    %v61 = vmul.f32 %v53, 0.00390625
    %v62 = vmul.f32 %v56, 0.00390625
    %v63 = vmul.f32 %v59, 0.00390625
    %v65 = vlaneseq
    %v66 = vshrl.u32 %v65, 7
    %v67 = vsub.s32 0, %v66
    %v68 = vrot.slane %v45, %v67
    %v74 = vlaneseq
    %v75 = vand.u32 %v74, 127
    %v76 = vlaneseq
    %v77 = vshrl.u32 %v76, 7
    %v78 = vsub.s32 %v75, %v77
    %v79 = vrot.slane %v60, %v78
    %v80 = vadd.s32 %v75, 4294967288
    %v81 = vlaneseq
    %v82 = vshrl.u32 %v81, 7
    %v83 = vsub.s32 %v80, %v82
    %v84 = vrot.slane %v61, %v83
    %vm85 = vcmask 130112
    %v86 = vsel %vm85, %v84, %v79
    %v87 = vlaneseq
    %v88 = vshrl.u32 %v87, 7
    %v89 = vsub.s32 %v75, %v88
    %v90 = vrot.slane %v62, %v89
    %v91 = vlaneseq
    %v92 = vshrl.u32 %v91, 7
    %v93 = vsub.s32 %v80, %v92
    %v94 = vrot.slane %v63, %v93
    %v95 = vsel %vm85, %v94, %v90
    %vm96 = vcmask 1041409
    %v97 = vsel %vm96, %v95, %v86
    %vm98 = vcmask 130048
    %v99 = vsel %vm98, %v97, 0
    %101 = vmatprep.subr.mxu0 0.0
    %102 = vmatpush1.msra.mxu0 %v43
    %103 = vmatprep.subr.mxu0 0.0
    %104 = vmatpush1.msra.mxu0 %v44
    %105 = vmatprep.subr.mxu0 0.0
    %106 = vmatpush1.msra.mxu0 0.0
    %107 = vmatprep.subr.mxu0 0.0
    %108 = vmatpush1.msra.mxu0 0.0
    %109 = vmatprep.subr.mxu0 0.0
    %110 = vmatpush1.msra.mxu0 0.0
    %111 = vmatprep.subr.mxu0 0.0
    %112 = vmatpush1.msra.mxu0 0.0
    %113 = vmatprep.subr.mxu0 0.0
    %114 = vmatpush1.msra.mxu0 0.0
    %115 = vmatprep.subr.mxu0 0.0
    %116 = vmatpush1.msra.mxu0 0.0
    %117 = vmatprep.subr.mxu0 0.0
    %118 = vmatpush1.msra.mxu0 0.0
    %119 = vmatprep.subr.mxu0 0.0
    %120 = vmatpush1.msra.mxu0 0.0
    %121 = vmatprep.subr.mxu0 0.0
    %122 = vmatpush1.msra.mxu0 0.0
    %123 = vmatprep.subr.mxu0 0.0
    %124 = vmatpush1.msra.mxu0 0.0
    %125 = vmatprep.subr.mxu0 0.0
    %126 = vmatpush1.msra.mxu0 0.0
    %127 = vmatprep.subr.mxu0 0.0
    %128 = vmatpush1.msra.mxu0 0.0
    %129 = vmatprep.subr.mxu0 0.0
    %130 = vmatpush1.msra.mxu0 0.0
    %131 = vmatprep.subr.mxu0 0.0
    %132 = vmatpush1.msra.mxu0 0.0
    %133 = vmatprep.subr.mxu0 0.0
    %134 = vmatpush1.msra.mxu0 0.0
    %135 = vmatprep.subr.mxu0 0.0
    %136 = vmatpush1.msra.mxu0 0.0
    %137 = vmatprep.subr.mxu0 0.0
    %138 = vmatpush1.msra.mxu0 0.0
    %139 = vmatprep.subr.mxu0 0.0
    %140 = vmatpush1.msra.mxu0 0.0
    %141 = vmatprep.subr.mxu0 0.0
    %142 = vmatpush1.msra.mxu0 0.0
    %143 = vmatprep.subr.mxu0 0.0
    %144 = vmatpush1.msra.mxu0 0.0
    %145 = vmatprep.subr.mxu0 0.0
    %146 = vmatpush1.msra.mxu0 0.0
    %147 = vmatprep.subr.mxu0 0.0
    %148 = vmatpush1.msra.mxu0 0.0
    %149 = vmatprep.subr.mxu0 0.0
    %150 = vmatpush1.msra.mxu0 0.0
    %151 = vmatprep.subr.mxu0 0.0
    %152 = vmatpush1.msra.mxu0 0.0
    %153 = vmatprep.subr.mxu0 0.0
    %154 = vmatpush1.msra.mxu0 0.0
    %155 = vmatprep.subr.mxu0 0.0
    %156 = vmatpush1.msra.mxu0 0.0
    %157 = vmatprep.subr.mxu0 0.0
    %158 = vmatpush1.msra.mxu0 0.0
    %159 = vmatprep.subr.mxu0 0.0
    %160 = vmatpush1.msra.mxu0 0.0
    %161 = vmatprep.subr.mxu0 0.0
    %162 = vmatpush1.msra.mxu0 0.0
    %163 = vmatprep.subr.mxu0 0.0
    %164 = vmatpush1.msra.mxu0 0.0
    %165 = vmatprep.mubr.f32.mxu0 0.0
    %166 = vmatmul.mubr.f32.gmra.mrb[0].mxu0 %v99
    %v167 = vpop.f32.mrb[0].mxu0
    %v168 = vadd.f32 %v68, %v167
    %v169 = vpop.f32.mrb[0].mxu0
    %170 = vdwg.mxu0
    %v171 = vmax.f32 %v168, 0.0
    %v173 = vlaneseq
    %v174 = vshrl.u32 %v173, 7
    %v175 = vsub.s32 0, %v174
    %v176 = vrot.slane %v47, %v175
    %vm178 = vcmask 64512
    %v180 = vsel %vm178, %v171, 0
    %182 = vmatprep.subr.mxu0 0.0
    %183 = vmatpush1.msra.mxu0 %v46
    %184 = vmatprep.subr.mxu0 0.0
    %185 = vmatpush1.msra.mxu0 0.0
    %186 = vmatprep.subr.mxu0 0.0
    %187 = vmatpush1.msra.mxu0 0.0
    %188 = vmatprep.subr.mxu0 0.0
    %189 = vmatpush1.msra.mxu0 0.0
    %190 = vmatprep.subr.mxu0 0.0
    %191 = vmatpush1.msra.mxu0 0.0
    %192 = vmatprep.subr.mxu0 0.0
    %193 = vmatpush1.msra.mxu0 0.0
    %194 = vmatprep.subr.mxu0 0.0
    %195 = vmatpush1.msra.mxu0 0.0
    %196 = vmatprep.subr.mxu0 0.0
    %197 = vmatpush1.msra.mxu0 0.0
    %198 = vmatprep.subr.mxu0 0.0
    %199 = vmatpush1.msra.mxu0 0.0
    %200 = vmatprep.subr.mxu0 0.0
    %201 = vmatpush1.msra.mxu0 0.0
    %202 = vmatprep.subr.mxu0 0.0
    %203 = vmatpush1.msra.mxu0 0.0
    %204 = vmatprep.subr.mxu0 0.0
    %205 = vmatpush1.msra.mxu0 0.0
    %206 = vmatprep.subr.mxu0 0.0
    %207 = vmatpush1.msra.mxu0 0.0
    %208 = vmatprep.subr.mxu0 0.0
    %209 = vmatpush1.msra.mxu0 0.0
    %210 = vmatprep.subr.mxu0 0.0
    %211 = vmatpush1.msra.mxu0 0.0
    %212 = vmatprep.subr.mxu0 0.0
    %213 = vmatpush1.msra.mxu0 0.0
    %214 = vmatprep.subr.mxu0 0.0
    %215 = vmatpush1.msra.mxu0 0.0
    %216 = vmatprep.subr.mxu0 0.0
    %217 = vmatpush1.msra.mxu0 0.0
    %218 = vmatprep.subr.mxu0 0.0
    %219 = vmatpush1.msra.mxu0 0.0
    %220 = vmatprep.subr.mxu0 0.0
    %221 = vmatpush1.msra.mxu0 0.0
    %222 = vmatprep.subr.mxu0 0.0
    %223 = vmatpush1.msra.mxu0 0.0
    %224 = vmatprep.subr.mxu0 0.0
    %225 = vmatpush1.msra.mxu0 0.0
    %226 = vmatprep.subr.mxu0 0.0
    %227 = vmatpush1.msra.mxu0 0.0
    %228 = vmatprep.subr.mxu0 0.0
    %229 = vmatpush1.msra.mxu0 0.0
    %230 = vmatprep.subr.mxu0 0.0
    %231 = vmatpush1.msra.mxu0 0.0
    %232 = vmatprep.subr.mxu0 0.0
    %233 = vmatpush1.msra.mxu0 0.0
    %234 = vmatprep.subr.mxu0 0.0
    %235 = vmatpush1.msra.mxu0 0.0
    %236 = vmatprep.subr.mxu0 0.0
    %237 = vmatpush1.msra.mxu0 0.0
    %238 = vmatprep.subr.mxu0 0.0
    %239 = vmatpush1.msra.mxu0 0.0
    %240 = vmatprep.subr.mxu0 0.0
    %241 = vmatpush1.msra.mxu0 0.0
    %242 = vmatprep.subr.mxu0 0.0
    %243 = vmatpush1.msra.mxu0 0.0
    %244 = vmatprep.subr.mxu0 0.0
    %245 = vmatpush1.msra.mxu0 0.0
    %246 = vmatprep.mubr.f32.mxu0 0.0
    %247 = vmatmul.mubr.f32.gmra.mrb[0].mxu0 %v180
    %v248 = vpop.f32.mrb[0].mxu0
    %v249 = vadd.f32 %v176, %v248
    %v250 = vpop.f32.mrb[0].mxu0
    %251 = vdwg.mxu0
    %v252 = vxor.u32 %v249, 2147483648
    %v253 = vmul.f32 %v252, 1.442695
    %v254 = vpow.pop %v253
    %v255 = vadd.f32 %v254, 1.0
    %v256 = vrcp.pop %v255
    %v257 = vmul.f32 1.0, %v256
    %v258 = vlaneseq
    %v259 = vshrl.u32 %v258, 7
    %v260 = vsub.s32 0, %v259
    %v261 = vrot.slane %v257, %v260
    %263 = vbcast.lane.b32.xlu0 %v261, 256
    %v264 = vpop.permute.xlu0 %263
    %s266 = sor.u32 256, 8
    %267 = vbcast.lane.b32.xlu0 %v261, %s266
    %v268 = vpop.permute.xlu0 %267
    %v269 = vlaneseq
    %v270 = vshrl.u32 %v269, 7
    %v271 = vsub.s32 1, %v270
    %v272 = vrot.slane %v257, %v271
    %274 = vbcast.lane.b32.xlu0 %v272, 256
    %v275 = vpop.permute.xlu0 %274
    %s277 = sor.u32 256, 8
    %278 = vbcast.lane.b32.xlu0 %v272, %s277
    %v279 = vpop.permute.xlu0 %278
    %v280 = vmul.f32 %v35, %v264
    %v281 = vmul.f32 %v36, %v264
    %v282 = vmul.f32 %v37, %v268
    %v283 = vmul.f32 %v38, %v268
    %v284 = vmul.f32 %v39, %v275
    %v285 = vmul.f32 %v40, %v275
    %v286 = vmul.f32 %v41, %v279
    %v287 = vmul.f32 %v42, %v279
    %288 = vst [vmem:[#allocation5] sm:$0xff] %v280
    %289 = vst [vmem:[#allocation5 + $0x8] sm:$0xff] %v281
    %290 = vst [vmem:[#allocation5 + $0x10] sm:$0xff] %v282
    %291 = vst [vmem:[#allocation5 + $0x18] sm:$0xff] %v283
    %292 = vst [vmem:[#allocation5 + $0x20] sm:$0xff] %v284
    %293 = vst [vmem:[#allocation5 + $0x28] sm:$0xff] %v285
    %294 = vst [vmem:[#allocation5 + $0x30] sm:$0xff] %v286
    %295 = vst [vmem:[#allocation5 + $0x38] sm:$0xff] %v287
    // Predicated region
    $region26: #{tpu_custom_call.1} parent=1 // pred_check
      _
    $region27: #{tpu_custom_call.1} parent=1 // pred_check_branch
      %297 = sbr.rel (0) target = $region29
    $region28: #{tpu_custom_call.1} parent=1 // pred_region
      %s299 = ssub.s32 1024, 1024
      %300 = vsyncadd [#allocation4], %s299
      %s301 = sshll.u32 [#allocation5], 4
      %s302 = int_to_ptr.vmem [resolvable:$true] %s301
      %307 = dma.vmem_to_hbm [thread:$0]  %s302, 1024, %s5, [#allocation4], 256, 256, 16
    $region29: #{tpu_custom_call.1} parent=1 // pred_fallthru
      _
    // Predicated region
    $region30: #{tpu_custom_call.1} parent=1 // pred_check
      _
    $region31: #{tpu_custom_call.1} parent=1 // pred_check_branch
      %309 = sbr.rel (0) target = $region33
    $region32: #{tpu_custom_call.1} parent=1 // pred_region
      %310 = dma.done [#allocation4], 1024
    $region33: #{tpu_custom_call.1} parent=1 // pred_fallthru
      _
    %311 = vsyncpa [#allocation3], 1
    %312 = vsyncpa [#allocation4], 1

</llo_original>
